<compile_context>
chip_gen: v6e
topology: v6e:2x2x1
jax: 0.10.0
libtpu: 0.0.40
codegen_flags: <defaults>
</compile_context>

<pallas_src>
import functools

import jax
import jax.numpy as jnp
from jax.experimental import pallas as pl
from jax.experimental.pallas import tpu as pltpu


def _center_loss_kernel(labels_ref, x_ref, w_hbm, loss_ref, wrows, sems, *,
                        batch, num_classes, pad_rows):
    # labels_ref: (Bp,) int32 in SMEM (scalar prefetch)
    # x_ref     : (tb, Dp) VMEM tile of features
    # w_hbm     : (C, Dp) weight, left in HBM (memory_space=pl.ANY)
    # loss_ref  : (1, 1) f32 output block (resident accumulator)
    # wrows     : (tb, Dp) VMEM scratch for the gathered weight rows
    # sems      : (tb,) DMA semaphores
    i = pl.program_id(0)
    tb = x_ref.shape[0]
    base = i * tb

    # Gather w[labels[base + r]] for this batch tile directly from HBM.
    # (Only B rows of `weight` ever leave HBM.)
    copies = []
    for r in range(tb):  # tb is static; small unrolled issue/wait loops
        cp = pltpu.make_async_copy(
            w_hbm.at[labels_ref[base + r]], wrows.at[r], sems.at[r])
        cp.start()
        copies.append(cp)
    for cp in copies:
        cp.wait()

    x = x_ref[...].astype(jnp.float32)       # (tb, Dp)
    w = wrows[...].astype(jnp.float32)       # (tb, Dp)

    # Per-row cosine similarity against the row's own class center.
    up = jnp.sum(x * w, axis=1, keepdims=True)                # (tb, 1)
    xn = jnp.sqrt(jnp.sum(x * x, axis=1, keepdims=True))      # (tb, 1)
    wn = jnp.sqrt(jnp.sum(w * w, axis=1, keepdims=True))      # (tb, 1)
    cos = up / (xn * wn + 1e-4)
    cos = jnp.clip(cos, 1e-12, 1.0e12)       # label-position clamp

    @pl.when(i == 0)
    def _():
        loss_ref[...] = jnp.zeros_like(loss_ref)

    loss_ref[...] += jnp.sum(cos, keepdims=True)

    @pl.when(i == pl.num_programs(0) - 1)
    def _():
        # + batch*(C-1)*1e-12 : PyTorch clamps the whole (B, C) matrix, so each
        #                       masked-out zero contributes 1e-12.
        # - pad_rows*1e-12    : zero-padded batch rows contributed exactly
        #                       1e-12 each inside the kernel.
        const = (batch * (num_classes - 1) - pad_rows) * 1e-12
        loss_ref[...] = -(loss_ref[...] + const) / batch


def center_loss(x, weight, labels, *, tile_b=128):
    """Computes -sum(clamp(cos_sim(x, w) * onehot(labels), 1e-12, 1e12)) / B."""
    B, D = x.shape
    C, Dw = weight.shape
    assert D == Dw

    # Lane-dense feature dim. (Callers with D % 128 == 0 pay nothing here;
    # otherwise padding the weight is a one-off pass over it.)
    Dp = pl.cdiv(D, 128) * 128
    if Dp != D:
        x = jnp.pad(x, ((0, 0), (0, Dp - D)))
        weight = jnp.pad(weight, ((0, 0), (0, Dp - D)))

    # Batch tile: multiple of 8 sublanes; pad batch with zero rows if needed.
    tb = pl.cdiv(min(tile_b, pl.cdiv(B, 8) * 8), 8) * 8
    G = pl.cdiv(B, tb)
    Bp = G * tb
    pad_rows = Bp - B
    if pad_rows:
        x = jnp.pad(x, ((0, pad_rows), (0, 0)))
    labels_p = jnp.pad(labels.astype(jnp.int32), (0, pad_rows))

    kernel = functools.partial(
        _center_loss_kernel, batch=B, num_classes=C, pad_rows=pad_rows)

    out = pl.pallas_call(
        kernel,
        out_shape=jax.ShapeDtypeStruct((1, 1), jnp.float32),
        grid_spec=pltpu.PrefetchScalarGridSpec(
            num_scalar_prefetch=1,           # labels -> SMEM
            grid=(G,),
            in_specs=[
                pl.BlockSpec((tb, Dp), lambda i, lab: (i, 0)),   # x tile
                pl.BlockSpec(memory_space=pl.ANY),               # weight in HBM
            ],
            out_specs=pl.BlockSpec((1, 1), lambda i, lab: (0, 0)),
            scratch_shapes=[
                pltpu.VMEM((tb, Dp), weight.dtype),   # gathered weight rows
                pltpu.SemaphoreType.DMA((tb,)),
            ],
        ),
        compiler_params=pltpu.CompilerParams(
            # The output block is an accumulator across the batch-tile axis.
            dimension_semantics=("arbitrary",),
        ),
    )(labels_p, x, weight)
    return out[0, 0]


def center_loss_ref(x, weight, labels):
    """Pure-JAX reference mirroring the PyTorch forward."""
    B = x.shape[0]
    C = weight.shape[0]
    up = x @ weight.T
    down1 = jnp.sqrt(jnp.sum(x ** 2, axis=1, keepdims=True))
    down2 = jnp.sqrt(jnp.sum(weight ** 2, axis=1, keepdims=True)).T
    distmat = up / (down1 * down2 + 1e-4)
    mask = (labels[:, None] == jnp.arange(C)[None, :]).astype(jnp.float32)
    dist = jnp.clip(distmat * mask, 1e-12, 1.0e12)
    return -(jnp.sum(dist) / B)


if __name__ == "__main__":
    key = jax.random.PRNGKey(0)
    kx, kw, kl = jax.random.split(key, 3)

    num_classes = 10
    feat_dim = 32
    batch = 8

    # Deterministic synthetic parameters / inputs (no checkpoint loading).
    x = jax.random.normal(kx, (batch, feat_dim), dtype=jnp.float32)
    weight = jax.random.normal(kw, (num_classes, feat_dim), dtype=jnp.float32)
    labels = jax.random.randint(kl, (batch,), 0, num_classes, dtype=jnp.int32)

    loss = center_loss(x, weight, labels)
    jax.block_until_ready(loss)

    ref = center_loss_ref(x, weight, labels)
    assert jnp.allclose(loss, ref, atol=1e-5, rtol=1e-5), (loss, ref)

    print("KERNEL_OK")
</pallas_src>

<mosaic_0001>
module attributes {stable_mosaic.version = 11 : i64} {
  func.func @_center_loss_kernel(%arg0: i32, %arg1: memref<8xi32, #tpu.memory_space<smem>>, %arg2: memref<8x128xf32, #tpu.memory_space<vmem>>, %arg3: memref<10x128xf32, #tpu.memory_space<any>>, %arg4: memref<1x1xf32, #tpu.memory_space<vmem>>, %arg5: memref<8x128xf32, #tpu.memory_space<vmem>>, %arg6: memref<8x!tpu.dma_semaphore, #tpu.memory_space<semaphore_mem>>) attributes {dimension_semantics = [#tpu.dimension_semantics<arbitrary>], iteration_bounds = array<i64: 1>, scalar_prefetch = 1 : i64, scratch_operands = 2 : i64, tpu.core_type = #tpu.core_type<tc>, window_params = [{transform_indices = @transform_0, window_bounds = array<i64: 8, 128>}, {}, {pipeline_mode = #tpu.pipeline_mode<synchronous>, transform_indices = @transform_2, window_bounds = array<i64: 1, 1>}]} {
    %c8_i32 = arith.constant 8 : i32
    %0 = arith.muli %arg0, %c8_i32 : i32
    %c0_i32 = arith.constant 0 : i32
    %1 = arith.addi %0, %c0_i32 : i32
    %2 = arith.index_cast %1 : i32 to index
    %3 = memref.load %arg1[%2] : memref<8xi32, #tpu.memory_space<smem>>
    %c0_i32_0 = arith.constant 0 : i32
    %c0_i32_1 = arith.constant 0 : i32
    %c0_i32_2 = arith.constant 0 : i32
    %4 = tpu.memref_slice %arg3[%3, %c0_i32_2] : memref<10x128xf32, #tpu.memory_space<any>> -> memref<1x128xf32, #tpu.memory_space<any>>
    %5 = tpu.memref_squeeze %4 : memref<1x128xf32, #tpu.memory_space<any>> -> memref<128xf32, #tpu.memory_space<any>>
    %c0_i32_3 = arith.constant 0 : i32
    %6 = tpu.memref_slice %arg5[%c0_i32_0, %c0_i32_3] : memref<8x128xf32, #tpu.memory_space<vmem>> -> memref<1x128xf32, #tpu.memory_space<vmem>>
    %7 = tpu.memref_squeeze %6 : memref<1x128xf32, #tpu.memory_space<vmem>> -> memref<128xf32, #tpu.memory_space<vmem>>
    %8 = tpu.memref_slice %arg6[%c0_i32_1] : memref<8x!tpu.dma_semaphore, #tpu.memory_space<semaphore_mem>> -> memref<1x!tpu.dma_semaphore, #tpu.memory_space<semaphore_mem>>
    %9 = tpu.memref_squeeze %8 : memref<1x!tpu.dma_semaphore, #tpu.memory_space<semaphore_mem>> -> memref<!tpu.dma_semaphore, #tpu.memory_space<semaphore_mem>>
    tpu.enqueue_dma source(%5 : memref<128xf32, #tpu.memory_space<any>>) target(%7 : memref<128xf32, #tpu.memory_space<vmem>>) target_semaphore(%9 : memref<!tpu.dma_semaphore, #tpu.memory_space<semaphore_mem>>)
    %c1_i32 = arith.constant 1 : i32
    %10 = arith.addi %0, %c1_i32 : i32
    %11 = arith.index_cast %10 : i32 to index
    %12 = memref.load %arg1[%11] : memref<8xi32, #tpu.memory_space<smem>>
    %c1_i32_4 = arith.constant 1 : i32
    %c1_i32_5 = arith.constant 1 : i32
    %c0_i32_6 = arith.constant 0 : i32
    %13 = tpu.memref_slice %arg3[%12, %c0_i32_6] : memref<10x128xf32, #tpu.memory_space<any>> -> memref<1x128xf32, #tpu.memory_space<any>>
    %14 = tpu.memref_squeeze %13 : memref<1x128xf32, #tpu.memory_space<any>> -> memref<128xf32, #tpu.memory_space<any>>
    %c0_i32_7 = arith.constant 0 : i32
    %15 = tpu.memref_slice %arg5[%c1_i32_4, %c0_i32_7] : memref<8x128xf32, #tpu.memory_space<vmem>> -> memref<1x128xf32, #tpu.memory_space<vmem>>
    %16 = tpu.memref_squeeze %15 : memref<1x128xf32, #tpu.memory_space<vmem>> -> memref<128xf32, #tpu.memory_space<vmem>>
    %17 = tpu.memref_slice %arg6[%c1_i32_5] : memref<8x!tpu.dma_semaphore, #tpu.memory_space<semaphore_mem>> -> memref<1x!tpu.dma_semaphore, #tpu.memory_space<semaphore_mem>>
    %18 = tpu.memref_squeeze %17 : memref<1x!tpu.dma_semaphore, #tpu.memory_space<semaphore_mem>> -> memref<!tpu.dma_semaphore, #tpu.memory_space<semaphore_mem>>
    tpu.enqueue_dma source(%14 : memref<128xf32, #tpu.memory_space<any>>) target(%16 : memref<128xf32, #tpu.memory_space<vmem>>) target_semaphore(%18 : memref<!tpu.dma_semaphore, #tpu.memory_space<semaphore_mem>>)
    %c2_i32 = arith.constant 2 : i32
    %19 = arith.addi %0, %c2_i32 : i32
    %20 = arith.index_cast %19 : i32 to index
    %21 = memref.load %arg1[%20] : memref<8xi32, #tpu.memory_space<smem>>
    %c2_i32_8 = arith.constant 2 : i32
    %c2_i32_9 = arith.constant 2 : i32
    %c0_i32_10 = arith.constant 0 : i32
    %22 = tpu.memref_slice %arg3[%21, %c0_i32_10] : memref<10x128xf32, #tpu.memory_space<any>> -> memref<1x128xf32, #tpu.memory_space<any>>
    %23 = tpu.memref_squeeze %22 : memref<1x128xf32, #tpu.memory_space<any>> -> memref<128xf32, #tpu.memory_space<any>>
    %c0_i32_11 = arith.constant 0 : i32
    %24 = tpu.memref_slice %arg5[%c2_i32_8, %c0_i32_11] : memref<8x128xf32, #tpu.memory_space<vmem>> -> memref<1x128xf32, #tpu.memory_space<vmem>>
    %25 = tpu.memref_squeeze %24 : memref<1x128xf32, #tpu.memory_space<vmem>> -> memref<128xf32, #tpu.memory_space<vmem>>
    %26 = tpu.memref_slice %arg6[%c2_i32_9] : memref<8x!tpu.dma_semaphore, #tpu.memory_space<semaphore_mem>> -> memref<1x!tpu.dma_semaphore, #tpu.memory_space<semaphore_mem>>
    %27 = tpu.memref_squeeze %26 : memref<1x!tpu.dma_semaphore, #tpu.memory_space<semaphore_mem>> -> memref<!tpu.dma_semaphore, #tpu.memory_space<semaphore_mem>>
    tpu.enqueue_dma source(%23 : memref<128xf32, #tpu.memory_space<any>>) target(%25 : memref<128xf32, #tpu.memory_space<vmem>>) target_semaphore(%27 : memref<!tpu.dma_semaphore, #tpu.memory_space<semaphore_mem>>)
    %c3_i32 = arith.constant 3 : i32
    %28 = arith.addi %0, %c3_i32 : i32
    %29 = arith.index_cast %28 : i32 to index
    %30 = memref.load %arg1[%29] : memref<8xi32, #tpu.memory_space<smem>>
    %c3_i32_12 = arith.constant 3 : i32
    %c3_i32_13 = arith.constant 3 : i32
    %c0_i32_14 = arith.constant 0 : i32
    %31 = tpu.memref_slice %arg3[%30, %c0_i32_14] : memref<10x128xf32, #tpu.memory_space<any>> -> memref<1x128xf32, #tpu.memory_space<any>>
    %32 = tpu.memref_squeeze %31 : memref<1x128xf32, #tpu.memory_space<any>> -> memref<128xf32, #tpu.memory_space<any>>
    %c0_i32_15 = arith.constant 0 : i32
    %33 = tpu.memref_slice %arg5[%c3_i32_12, %c0_i32_15] : memref<8x128xf32, #tpu.memory_space<vmem>> -> memref<1x128xf32, #tpu.memory_space<vmem>>
    %34 = tpu.memref_squeeze %33 : memref<1x128xf32, #tpu.memory_space<vmem>> -> memref<128xf32, #tpu.memory_space<vmem>>
    %35 = tpu.memref_slice %arg6[%c3_i32_13] : memref<8x!tpu.dma_semaphore, #tpu.memory_space<semaphore_mem>> -> memref<1x!tpu.dma_semaphore, #tpu.memory_space<semaphore_mem>>
    %36 = tpu.memref_squeeze %35 : memref<1x!tpu.dma_semaphore, #tpu.memory_space<semaphore_mem>> -> memref<!tpu.dma_semaphore, #tpu.memory_space<semaphore_mem>>
    tpu.enqueue_dma source(%32 : memref<128xf32, #tpu.memory_space<any>>) target(%34 : memref<128xf32, #tpu.memory_space<vmem>>) target_semaphore(%36 : memref<!tpu.dma_semaphore, #tpu.memory_space<semaphore_mem>>)
    %c4_i32 = arith.constant 4 : i32
    %37 = arith.addi %0, %c4_i32 : i32
    %38 = arith.index_cast %37 : i32 to index
    %39 = memref.load %arg1[%38] : memref<8xi32, #tpu.memory_space<smem>>
    %c4_i32_16 = arith.constant 4 : i32
    %c4_i32_17 = arith.constant 4 : i32
    %c0_i32_18 = arith.constant 0 : i32
    %40 = tpu.memref_slice %arg3[%39, %c0_i32_18] : memref<10x128xf32, #tpu.memory_space<any>> -> memref<1x128xf32, #tpu.memory_space<any>>
    %41 = tpu.memref_squeeze %40 : memref<1x128xf32, #tpu.memory_space<any>> -> memref<128xf32, #tpu.memory_space<any>>
    %c0_i32_19 = arith.constant 0 : i32
    %42 = tpu.memref_slice %arg5[%c4_i32_16, %c0_i32_19] : memref<8x128xf32, #tpu.memory_space<vmem>> -> memref<1x128xf32, #tpu.memory_space<vmem>>
    %43 = tpu.memref_squeeze %42 : memref<1x128xf32, #tpu.memory_space<vmem>> -> memref<128xf32, #tpu.memory_space<vmem>>
    %44 = tpu.memref_slice %arg6[%c4_i32_17] : memref<8x!tpu.dma_semaphore, #tpu.memory_space<semaphore_mem>> -> memref<1x!tpu.dma_semaphore, #tpu.memory_space<semaphore_mem>>
    %45 = tpu.memref_squeeze %44 : memref<1x!tpu.dma_semaphore, #tpu.memory_space<semaphore_mem>> -> memref<!tpu.dma_semaphore, #tpu.memory_space<semaphore_mem>>
    tpu.enqueue_dma source(%41 : memref<128xf32, #tpu.memory_space<any>>) target(%43 : memref<128xf32, #tpu.memory_space<vmem>>) target_semaphore(%45 : memref<!tpu.dma_semaphore, #tpu.memory_space<semaphore_mem>>)
    %c5_i32 = arith.constant 5 : i32
    %46 = arith.addi %0, %c5_i32 : i32
    %47 = arith.index_cast %46 : i32 to index
    %48 = memref.load %arg1[%47] : memref<8xi32, #tpu.memory_space<smem>>
    %c5_i32_20 = arith.constant 5 : i32
    %c5_i32_21 = arith.constant 5 : i32
    %c0_i32_22 = arith.constant 0 : i32
    %49 = tpu.memref_slice %arg3[%48, %c0_i32_22] : memref<10x128xf32, #tpu.memory_space<any>> -> memref<1x128xf32, #tpu.memory_space<any>>
    %50 = tpu.memref_squeeze %49 : memref<1x128xf32, #tpu.memory_space<any>> -> memref<128xf32, #tpu.memory_space<any>>
    %c0_i32_23 = arith.constant 0 : i32
    %51 = tpu.memref_slice %arg5[%c5_i32_20, %c0_i32_23] : memref<8x128xf32, #tpu.memory_space<vmem>> -> memref<1x128xf32, #tpu.memory_space<vmem>>
    %52 = tpu.memref_squeeze %51 : memref<1x128xf32, #tpu.memory_space<vmem>> -> memref<128xf32, #tpu.memory_space<vmem>>
    %53 = tpu.memref_slice %arg6[%c5_i32_21] : memref<8x!tpu.dma_semaphore, #tpu.memory_space<semaphore_mem>> -> memref<1x!tpu.dma_semaphore, #tpu.memory_space<semaphore_mem>>
    %54 = tpu.memref_squeeze %53 : memref<1x!tpu.dma_semaphore, #tpu.memory_space<semaphore_mem>> -> memref<!tpu.dma_semaphore, #tpu.memory_space<semaphore_mem>>
    tpu.enqueue_dma source(%50 : memref<128xf32, #tpu.memory_space<any>>) target(%52 : memref<128xf32, #tpu.memory_space<vmem>>) target_semaphore(%54 : memref<!tpu.dma_semaphore, #tpu.memory_space<semaphore_mem>>)
    %c6_i32 = arith.constant 6 : i32
    %55 = arith.addi %0, %c6_i32 : i32
    %56 = arith.index_cast %55 : i32 to index
    %57 = memref.load %arg1[%56] : memref<8xi32, #tpu.memory_space<smem>>
    %c6_i32_24 = arith.constant 6 : i32
    %c6_i32_25 = arith.constant 6 : i32
    %c0_i32_26 = arith.constant 0 : i32
    %58 = tpu.memref_slice %arg3[%57, %c0_i32_26] : memref<10x128xf32, #tpu.memory_space<any>> -> memref<1x128xf32, #tpu.memory_space<any>>
    %59 = tpu.memref_squeeze %58 : memref<1x128xf32, #tpu.memory_space<any>> -> memref<128xf32, #tpu.memory_space<any>>
    %c0_i32_27 = arith.constant 0 : i32
    %60 = tpu.memref_slice %arg5[%c6_i32_24, %c0_i32_27] : memref<8x128xf32, #tpu.memory_space<vmem>> -> memref<1x128xf32, #tpu.memory_space<vmem>>
    %61 = tpu.memref_squeeze %60 : memref<1x128xf32, #tpu.memory_space<vmem>> -> memref<128xf32, #tpu.memory_space<vmem>>
    %62 = tpu.memref_slice %arg6[%c6_i32_25] : memref<8x!tpu.dma_semaphore, #tpu.memory_space<semaphore_mem>> -> memref<1x!tpu.dma_semaphore, #tpu.memory_space<semaphore_mem>>
    %63 = tpu.memref_squeeze %62 : memref<1x!tpu.dma_semaphore, #tpu.memory_space<semaphore_mem>> -> memref<!tpu.dma_semaphore, #tpu.memory_space<semaphore_mem>>
    tpu.enqueue_dma source(%59 : memref<128xf32, #tpu.memory_space<any>>) target(%61 : memref<128xf32, #tpu.memory_space<vmem>>) target_semaphore(%63 : memref<!tpu.dma_semaphore, #tpu.memory_space<semaphore_mem>>)
    %c7_i32 = arith.constant 7 : i32
    %64 = arith.addi %0, %c7_i32 : i32
    %65 = arith.index_cast %64 : i32 to index
    %66 = memref.load %arg1[%65] : memref<8xi32, #tpu.memory_space<smem>>
    %c7_i32_28 = arith.constant 7 : i32
    %c7_i32_29 = arith.constant 7 : i32
    %c0_i32_30 = arith.constant 0 : i32
    %67 = tpu.memref_slice %arg3[%66, %c0_i32_30] : memref<10x128xf32, #tpu.memory_space<any>> -> memref<1x128xf32, #tpu.memory_space<any>>
    %68 = tpu.memref_squeeze %67 : memref<1x128xf32, #tpu.memory_space<any>> -> memref<128xf32, #tpu.memory_space<any>>
    %c0_i32_31 = arith.constant 0 : i32
    %69 = tpu.memref_slice %arg5[%c7_i32_28, %c0_i32_31] : memref<8x128xf32, #tpu.memory_space<vmem>> -> memref<1x128xf32, #tpu.memory_space<vmem>>
    %70 = tpu.memref_squeeze %69 : memref<1x128xf32, #tpu.memory_space<vmem>> -> memref<128xf32, #tpu.memory_space<vmem>>
    %71 = tpu.memref_slice %arg6[%c7_i32_29] : memref<8x!tpu.dma_semaphore, #tpu.memory_space<semaphore_mem>> -> memref<1x!tpu.dma_semaphore, #tpu.memory_space<semaphore_mem>>
    %72 = tpu.memref_squeeze %71 : memref<1x!tpu.dma_semaphore, #tpu.memory_space<semaphore_mem>> -> memref<!tpu.dma_semaphore, #tpu.memory_space<semaphore_mem>>
    tpu.enqueue_dma source(%68 : memref<128xf32, #tpu.memory_space<any>>) target(%70 : memref<128xf32, #tpu.memory_space<vmem>>) target_semaphore(%72 : memref<!tpu.dma_semaphore, #tpu.memory_space<semaphore_mem>>)
    %c0_i32_32 = arith.constant 0 : i32
    %c0_i32_33 = arith.constant 0 : i32
    %c0_i32_34 = arith.constant 0 : i32
    %73 = tpu.memref_slice %arg3[%3, %c0_i32_34] : memref<10x128xf32, #tpu.memory_space<any>> -> memref<1x128xf32, #tpu.memory_space<any>>
    %74 = tpu.memref_squeeze %73 : memref<1x128xf32, #tpu.memory_space<any>> -> memref<128xf32, #tpu.memory_space<any>>
    %c0_i32_35 = arith.constant 0 : i32
    %75 = tpu.memref_slice %arg5[%c0_i32_32, %c0_i32_35] : memref<8x128xf32, #tpu.memory_space<vmem>> -> memref<1x128xf32, #tpu.memory_space<vmem>>
    %76 = tpu.memref_squeeze %75 : memref<1x128xf32, #tpu.memory_space<vmem>> -> memref<128xf32, #tpu.memory_space<vmem>>
    %77 = tpu.memref_slice %arg6[%c0_i32_33] : memref<8x!tpu.dma_semaphore, #tpu.memory_space<semaphore_mem>> -> memref<1x!tpu.dma_semaphore, #tpu.memory_space<semaphore_mem>>
    %78 = tpu.memref_squeeze %77 : memref<1x!tpu.dma_semaphore, #tpu.memory_space<semaphore_mem>> -> memref<!tpu.dma_semaphore, #tpu.memory_space<semaphore_mem>>
    tpu.wait_dma2 semaphore(%78 : memref<!tpu.dma_semaphore, #tpu.memory_space<semaphore_mem>>) src(%74 : memref<128xf32, #tpu.memory_space<any>>) dst(%76 : memref<128xf32, #tpu.memory_space<vmem>>)
    %c1_i32_36 = arith.constant 1 : i32
    %c1_i32_37 = arith.constant 1 : i32
    %c0_i32_38 = arith.constant 0 : i32
    %79 = tpu.memref_slice %arg3[%12, %c0_i32_38] : memref<10x128xf32, #tpu.memory_space<any>> -> memref<1x128xf32, #tpu.memory_space<any>>
    %80 = tpu.memref_squeeze %79 : memref<1x128xf32, #tpu.memory_space<any>> -> memref<128xf32, #tpu.memory_space<any>>
    %c0_i32_39 = arith.constant 0 : i32
    %81 = tpu.memref_slice %arg5[%c1_i32_36, %c0_i32_39] : memref<8x128xf32, #tpu.memory_space<vmem>> -> memref<1x128xf32, #tpu.memory_space<vmem>>
    %82 = tpu.memref_squeeze %81 : memref<1x128xf32, #tpu.memory_space<vmem>> -> memref<128xf32, #tpu.memory_space<vmem>>
    %83 = tpu.memref_slice %arg6[%c1_i32_37] : memref<8x!tpu.dma_semaphore, #tpu.memory_space<semaphore_mem>> -> memref<1x!tpu.dma_semaphore, #tpu.memory_space<semaphore_mem>>
    %84 = tpu.memref_squeeze %83 : memref<1x!tpu.dma_semaphore, #tpu.memory_space<semaphore_mem>> -> memref<!tpu.dma_semaphore, #tpu.memory_space<semaphore_mem>>
    tpu.wait_dma2 semaphore(%84 : memref<!tpu.dma_semaphore, #tpu.memory_space<semaphore_mem>>) src(%80 : memref<128xf32, #tpu.memory_space<any>>) dst(%82 : memref<128xf32, #tpu.memory_space<vmem>>)
    %c2_i32_40 = arith.constant 2 : i32
    %c2_i32_41 = arith.constant 2 : i32
    %c0_i32_42 = arith.constant 0 : i32
    %85 = tpu.memref_slice %arg3[%21, %c0_i32_42] : memref<10x128xf32, #tpu.memory_space<any>> -> memref<1x128xf32, #tpu.memory_space<any>>
    %86 = tpu.memref_squeeze %85 : memref<1x128xf32, #tpu.memory_space<any>> -> memref<128xf32, #tpu.memory_space<any>>
    %c0_i32_43 = arith.constant 0 : i32
    %87 = tpu.memref_slice %arg5[%c2_i32_40, %c0_i32_43] : memref<8x128xf32, #tpu.memory_space<vmem>> -> memref<1x128xf32, #tpu.memory_space<vmem>>
    %88 = tpu.memref_squeeze %87 : memref<1x128xf32, #tpu.memory_space<vmem>> -> memref<128xf32, #tpu.memory_space<vmem>>
    %89 = tpu.memref_slice %arg6[%c2_i32_41] : memref<8x!tpu.dma_semaphore, #tpu.memory_space<semaphore_mem>> -> memref<1x!tpu.dma_semaphore, #tpu.memory_space<semaphore_mem>>
    %90 = tpu.memref_squeeze %89 : memref<1x!tpu.dma_semaphore, #tpu.memory_space<semaphore_mem>> -> memref<!tpu.dma_semaphore, #tpu.memory_space<semaphore_mem>>
    tpu.wait_dma2 semaphore(%90 : memref<!tpu.dma_semaphore, #tpu.memory_space<semaphore_mem>>) src(%86 : memref<128xf32, #tpu.memory_space<any>>) dst(%88 : memref<128xf32, #tpu.memory_space<vmem>>)
    %c3_i32_44 = arith.constant 3 : i32
    %c3_i32_45 = arith.constant 3 : i32
    %c0_i32_46 = arith.constant 0 : i32
    %91 = tpu.memref_slice %arg3[%30, %c0_i32_46] : memref<10x128xf32, #tpu.memory_space<any>> -> memref<1x128xf32, #tpu.memory_space<any>>
    %92 = tpu.memref_squeeze %91 : memref<1x128xf32, #tpu.memory_space<any>> -> memref<128xf32, #tpu.memory_space<any>>
    %c0_i32_47 = arith.constant 0 : i32
    %93 = tpu.memref_slice %arg5[%c3_i32_44, %c0_i32_47] : memref<8x128xf32, #tpu.memory_space<vmem>> -> memref<1x128xf32, #tpu.memory_space<vmem>>
    %94 = tpu.memref_squeeze %93 : memref<1x128xf32, #tpu.memory_space<vmem>> -> memref<128xf32, #tpu.memory_space<vmem>>
    %95 = tpu.memref_slice %arg6[%c3_i32_45] : memref<8x!tpu.dma_semaphore, #tpu.memory_space<semaphore_mem>> -> memref<1x!tpu.dma_semaphore, #tpu.memory_space<semaphore_mem>>
    %96 = tpu.memref_squeeze %95 : memref<1x!tpu.dma_semaphore, #tpu.memory_space<semaphore_mem>> -> memref<!tpu.dma_semaphore, #tpu.memory_space<semaphore_mem>>
    tpu.wait_dma2 semaphore(%96 : memref<!tpu.dma_semaphore, #tpu.memory_space<semaphore_mem>>) src(%92 : memref<128xf32, #tpu.memory_space<any>>) dst(%94 : memref<128xf32, #tpu.memory_space<vmem>>)
    %c4_i32_48 = arith.constant 4 : i32
    %c4_i32_49 = arith.constant 4 : i32
    %c0_i32_50 = arith.constant 0 : i32
    %97 = tpu.memref_slice %arg3[%39, %c0_i32_50] : memref<10x128xf32, #tpu.memory_space<any>> -> memref<1x128xf32, #tpu.memory_space<any>>
    %98 = tpu.memref_squeeze %97 : memref<1x128xf32, #tpu.memory_space<any>> -> memref<128xf32, #tpu.memory_space<any>>
    %c0_i32_51 = arith.constant 0 : i32
    %99 = tpu.memref_slice %arg5[%c4_i32_48, %c0_i32_51] : memref<8x128xf32, #tpu.memory_space<vmem>> -> memref<1x128xf32, #tpu.memory_space<vmem>>
    %100 = tpu.memref_squeeze %99 : memref<1x128xf32, #tpu.memory_space<vmem>> -> memref<128xf32, #tpu.memory_space<vmem>>
    %101 = tpu.memref_slice %arg6[%c4_i32_49] : memref<8x!tpu.dma_semaphore, #tpu.memory_space<semaphore_mem>> -> memref<1x!tpu.dma_semaphore, #tpu.memory_space<semaphore_mem>>
    %102 = tpu.memref_squeeze %101 : memref<1x!tpu.dma_semaphore, #tpu.memory_space<semaphore_mem>> -> memref<!tpu.dma_semaphore, #tpu.memory_space<semaphore_mem>>
    tpu.wait_dma2 semaphore(%102 : memref<!tpu.dma_semaphore, #tpu.memory_space<semaphore_mem>>) src(%98 : memref<128xf32, #tpu.memory_space<any>>) dst(%100 : memref<128xf32, #tpu.memory_space<vmem>>)
    %c5_i32_52 = arith.constant 5 : i32
    %c5_i32_53 = arith.constant 5 : i32
    %c0_i32_54 = arith.constant 0 : i32
    %103 = tpu.memref_slice %arg3[%48, %c0_i32_54] : memref<10x128xf32, #tpu.memory_space<any>> -> memref<1x128xf32, #tpu.memory_space<any>>
    %104 = tpu.memref_squeeze %103 : memref<1x128xf32, #tpu.memory_space<any>> -> memref<128xf32, #tpu.memory_space<any>>
    %c0_i32_55 = arith.constant 0 : i32
    %105 = tpu.memref_slice %arg5[%c5_i32_52, %c0_i32_55] : memref<8x128xf32, #tpu.memory_space<vmem>> -> memref<1x128xf32, #tpu.memory_space<vmem>>
    %106 = tpu.memref_squeeze %105 : memref<1x128xf32, #tpu.memory_space<vmem>> -> memref<128xf32, #tpu.memory_space<vmem>>
    %107 = tpu.memref_slice %arg6[%c5_i32_53] : memref<8x!tpu.dma_semaphore, #tpu.memory_space<semaphore_mem>> -> memref<1x!tpu.dma_semaphore, #tpu.memory_space<semaphore_mem>>
    %108 = tpu.memref_squeeze %107 : memref<1x!tpu.dma_semaphore, #tpu.memory_space<semaphore_mem>> -> memref<!tpu.dma_semaphore, #tpu.memory_space<semaphore_mem>>
    tpu.wait_dma2 semaphore(%108 : memref<!tpu.dma_semaphore, #tpu.memory_space<semaphore_mem>>) src(%104 : memref<128xf32, #tpu.memory_space<any>>) dst(%106 : memref<128xf32, #tpu.memory_space<vmem>>)
    %c6_i32_56 = arith.constant 6 : i32
    %c6_i32_57 = arith.constant 6 : i32
    %c0_i32_58 = arith.constant 0 : i32
    %109 = tpu.memref_slice %arg3[%57, %c0_i32_58] : memref<10x128xf32, #tpu.memory_space<any>> -> memref<1x128xf32, #tpu.memory_space<any>>
    %110 = tpu.memref_squeeze %109 : memref<1x128xf32, #tpu.memory_space<any>> -> memref<128xf32, #tpu.memory_space<any>>
    %c0_i32_59 = arith.constant 0 : i32
    %111 = tpu.memref_slice %arg5[%c6_i32_56, %c0_i32_59] : memref<8x128xf32, #tpu.memory_space<vmem>> -> memref<1x128xf32, #tpu.memory_space<vmem>>
    %112 = tpu.memref_squeeze %111 : memref<1x128xf32, #tpu.memory_space<vmem>> -> memref<128xf32, #tpu.memory_space<vmem>>
    %113 = tpu.memref_slice %arg6[%c6_i32_57] : memref<8x!tpu.dma_semaphore, #tpu.memory_space<semaphore_mem>> -> memref<1x!tpu.dma_semaphore, #tpu.memory_space<semaphore_mem>>
    %114 = tpu.memref_squeeze %113 : memref<1x!tpu.dma_semaphore, #tpu.memory_space<semaphore_mem>> -> memref<!tpu.dma_semaphore, #tpu.memory_space<semaphore_mem>>
    tpu.wait_dma2 semaphore(%114 : memref<!tpu.dma_semaphore, #tpu.memory_space<semaphore_mem>>) src(%110 : memref<128xf32, #tpu.memory_space<any>>) dst(%112 : memref<128xf32, #tpu.memory_space<vmem>>)
    %c7_i32_60 = arith.constant 7 : i32
    %c7_i32_61 = arith.constant 7 : i32
    %c0_i32_62 = arith.constant 0 : i32
    %115 = tpu.memref_slice %arg3[%66, %c0_i32_62] : memref<10x128xf32, #tpu.memory_space<any>> -> memref<1x128xf32, #tpu.memory_space<any>>
    %116 = tpu.memref_squeeze %115 : memref<1x128xf32, #tpu.memory_space<any>> -> memref<128xf32, #tpu.memory_space<any>>
    %c0_i32_63 = arith.constant 0 : i32
    %117 = tpu.memref_slice %arg5[%c7_i32_60, %c0_i32_63] : memref<8x128xf32, #tpu.memory_space<vmem>> -> memref<1x128xf32, #tpu.memory_space<vmem>>
    %118 = tpu.memref_squeeze %117 : memref<1x128xf32, #tpu.memory_space<vmem>> -> memref<128xf32, #tpu.memory_space<vmem>>
    %119 = tpu.memref_slice %arg6[%c7_i32_61] : memref<8x!tpu.dma_semaphore, #tpu.memory_space<semaphore_mem>> -> memref<1x!tpu.dma_semaphore, #tpu.memory_space<semaphore_mem>>
    %120 = tpu.memref_squeeze %119 : memref<1x!tpu.dma_semaphore, #tpu.memory_space<semaphore_mem>> -> memref<!tpu.dma_semaphore, #tpu.memory_space<semaphore_mem>>
    tpu.wait_dma2 semaphore(%120 : memref<!tpu.dma_semaphore, #tpu.memory_space<semaphore_mem>>) src(%116 : memref<128xf32, #tpu.memory_space<any>>) dst(%118 : memref<128xf32, #tpu.memory_space<vmem>>)
    %c0 = arith.constant 0 : index
    %c0_64 = arith.constant 0 : index
    %121 = vector.load %arg2[%c0, %c0_64] : memref<8x128xf32, #tpu.memory_space<vmem>>, vector<8x128xf32>
    %c0_65 = arith.constant 0 : index
    %c0_66 = arith.constant 0 : index
    %122 = vector.load %arg5[%c0_65, %c0_66] : memref<8x128xf32, #tpu.memory_space<vmem>>, vector<8x128xf32>
    %123 = arith.mulf %121, %122 : vector<8x128xf32>
    %cst = arith.constant dense<0.000000e+00> : vector<8xf32>
    %124 = vector.multi_reduction <add>, %123, %cst [1] : vector<8x128xf32> to vector<8xf32>
    %125 = vector.shape_cast %124 : vector<8xf32> to vector<8x1xf32>
    %126 = arith.mulf %121, %121 : vector<8x128xf32>
    %cst_67 = arith.constant dense<0.000000e+00> : vector<8xf32>
    %127 = vector.multi_reduction <add>, %126, %cst_67 [1] : vector<8x128xf32> to vector<8xf32>
    %128 = vector.shape_cast %127 : vector<8xf32> to vector<8x1xf32>
    %129 = math.sqrt %128 : vector<8x1xf32>
    %130 = arith.mulf %122, %122 : vector<8x128xf32>
    %cst_68 = arith.constant dense<0.000000e+00> : vector<8xf32>
    %131 = vector.multi_reduction <add>, %130, %cst_68 [1] : vector<8x128xf32> to vector<8xf32>
    %132 = vector.shape_cast %131 : vector<8xf32> to vector<8x1xf32>
    %133 = math.sqrt %132 : vector<8x1xf32>
    %134 = arith.mulf %129, %133 : vector<8x1xf32>
    %cst_69 = arith.constant 9.99999974E-5 : f32
    %135 = vector.broadcast %cst_69 : f32 to vector<8x1xf32>
    %136 = arith.addf %134, %135 : vector<8x1xf32>
    %137 = arith.divf %125, %136 : vector<8x1xf32>
    %cst_70 = arith.constant 9.99999996E-13 : f32
    %cst_71 = arith.constant 9.99999995E+11 : f32
    %138 = vector.broadcast %cst_70 : f32 to vector<8x1xf32>
    %139 = arith.maximumf %138, %137 : vector<8x1xf32>
    %140 = vector.broadcast %cst_71 : f32 to vector<8x1xf32>
    %141 = arith.minimumf %140, %139 : vector<8x1xf32>
    %c0_i32_72 = arith.constant 0 : i32
    %142 = arith.cmpi eq, %arg0, %c0_i32_72 : i32
    %143 = arith.extui %142 : i1 to i32
    %c0_i32_73 = arith.constant 0 : i32
    %144 = arith.cmpi ne, %143, %c0_i32_73 : i32
    scf.if %144 {
      %cst_81 = arith.constant 0.000000e+00 : f32
      %156 = vector.broadcast %cst_81 : f32 to vector<1x1xf32>
      %c0_82 = arith.constant 0 : index
      %c0_83 = arith.constant 0 : index
      %157 = vector.load %arg4[%c0_82, %c0_83] : memref<1x1xf32, #tpu.memory_space<vmem>>, vector<1x1xf32>
      tpu.vector_store %arg4[%c0_82, %c0_83], %156 {strides = array<i32>} : memref<1x1xf32, #tpu.memory_space<vmem>>, vector<1x1xf32>,
    } else {
    }
    %c0_74 = arith.constant 0 : index
    %c0_75 = arith.constant 0 : index
    %145 = vector.load %arg4[%c0_74, %c0_75] : memref<1x1xf32, #tpu.memory_space<vmem>>, vector<1x1xf32>
    %146 = vector.shape_cast %141 : vector<8x1xf32> to vector<1x8x1xf32>
    %cst_76 = arith.constant dense<0.000000e+00> : vector<1xf32>
    %147 = vector.multi_reduction <add>, %146, %cst_76 [1, 2] : vector<1x8x1xf32> to vector<1xf32>
    %148 = vector.shape_cast %147 : vector<1xf32> to vector<1x1x1xf32>
    %149 = vector.extract %148[0, 0, 0] : f32 from vector<1x1x1xf32>
    %150 = vector.broadcast %149 : f32 to vector<1x1xf32>
    %151 = arith.addf %145, %150 : vector<1x1xf32>
    %c0_77 = arith.constant 0 : index
    %c0_78 = arith.constant 0 : index
    %152 = vector.load %arg4[%c0_77, %c0_78] : memref<1x1xf32, #tpu.memory_space<vmem>>, vector<1x1xf32>
    tpu.vector_store %arg4[%c0_77, %c0_78], %151 {strides = array<i32>} : memref<1x1xf32, #tpu.memory_space<vmem>>, vector<1x1xf32>,
    %c0_i32_79 = arith.constant 0 : i32
    %153 = arith.cmpi eq, %arg0, %c0_i32_79 : i32
    %154 = arith.extui %153 : i1 to i32
    %c0_i32_80 = arith.constant 0 : i32
    %155 = arith.cmpi ne, %154, %c0_i32_80 : i32
    scf.if %155 {
      %c0_81 = arith.constant 0 : index
      %c0_82 = arith.constant 0 : index
      %156 = vector.load %arg4[%c0_81, %c0_82] : memref<1x1xf32, #tpu.memory_space<vmem>>, vector<1x1xf32>
      %cst_83 = arith.constant 7.200000e-11 : f32
      %157 = vector.broadcast %cst_83 : f32 to vector<1x1xf32>
      %158 = arith.addf %156, %157 : vector<1x1xf32>
      %cst_84 = arith.constant 0.000000e+00 : f32
      %159 = vector.broadcast %cst_84 : f32 to vector<1x1xf32>
      %160 = arith.subf %159, %158 : vector<1x1xf32>
      %cst_85 = arith.constant 8.000000e+00 : f32
      %161 = vector.broadcast %cst_85 : f32 to vector<1x1xf32>
      %162 = arith.divf %160, %161 : vector<1x1xf32>
      %c0_86 = arith.constant 0 : index
      %c0_87 = arith.constant 0 : index
      %163 = vector.load %arg4[%c0_86, %c0_87] : memref<1x1xf32, #tpu.memory_space<vmem>>, vector<1x1xf32>
      tpu.vector_store %arg4[%c0_86, %c0_87], %162 {strides = array<i32>} : memref<1x1xf32, #tpu.memory_space<vmem>>, vector<1x1xf32>,
    } else {
    }
    return
  }
  func.func @transform_0(%arg0: i32, %arg1: memref<8xi32, #tpu.memory_space<smem>>) -> (i32, i32) {
    %c0_i32 = arith.constant 0 : i32
    %c0_i32_0 = arith.constant 0 : i32
    return %arg0, %c0_i32 : i32, i32
  }
  func.func @transform_2(%arg0: i32, %arg1: memref<8xi32, #tpu.memory_space<smem>>) -> (i32, i32) {
    %c0_i32 = arith.constant 0 : i32
    %c0_i32_0 = arith.constant 0 : i32
    %c0_i32_1 = arith.constant 0 : i32
    return %c0_i32, %c0_i32_0 : i32, i32
  }
}

</mosaic_0001>

<llo_original>
// kernel: tpu_custom_call.1
$region0: #{tpu_custom_call.1}
  #allocation0 [shape = 'u32[]', space=smem, size = 0x4, offset = 0x4, fixed_abs, tag = 'smem constant byte address 0x4 - core index']
  #allocation1 [shape = 'u32[144,128]{1,0:T(1,128)}', space=vmem, size = 0x12000, scoped, tag = 'internal scratch']
  #allocation2 [shape = 'f32[8,128]{1,0:T(8,128)}', space=vmem, size = 0x1000, scoped, tag = 'scratch operand']
  #allocation3 [shape = 's32[8]{0}', space=sflag, size = 0x20, scoped, tag = 'scratch operand']
  #allocation4 [shape = 's32[1]{0}', space=sflag, size = 0x4, scoped, tag = 'scoped memory for tpu_custom_call.1']
  #allocation5 [shape = 'u8[512]{0}', space=smem, size = 0x200, scoped, tag = 'prefetched SMEM operand 0']
  #allocation10 [shape = 's32[]', space=sflag, size = 0x4, offset = 0, fixed_abs, tag = 'sflag constant byte address 0x0 - dummy sync flag']
  #allocation11 [shape = 's32[]', space=sflag, size = 0x4, offset = 0, fixed_abs, tag = 'sflag constant byte address 0x0 - dummy sync flag']
  #allocation12 [shape = 'u32[]', space=smem, size = 0x4, offset = 0x44, fixed_abs, tag = 'smem constant byte address 0x44 - assertion arg 0']
  #allocation13 [shape = 'u32[]', space=smem, size = 0x4, offset = 0x48, fixed_abs, tag = 'smem constant byte address 0x48 - assertion arg 1']
  #allocation14 [shape = 's32[]', space=sflag, size = 0x4, offset = 0, fixed_abs, tag = 'sflag constant byte address 0x0 - dummy sync flag']
  #allocation15 [shape = 's32[]', space=sflag, size = 0x4, offset = 0, fixed_abs, tag = 'sflag constant byte address 0x0 - dummy sync flag']
  #allocation16 [shape = 's32[]', space=sflag, size = 0x4, offset = 0, fixed_abs, tag = 'sflag constant byte address 0x0 - dummy sync flag']
  #allocation17 [shape = 's32[]', space=sflag, size = 0x4, offset = 0, fixed_abs, tag = 'sflag constant byte address 0x0 - dummy sync flag']
  #allocation18 [shape = 's32[]', space=sflag, size = 0x4, offset = 0, fixed_abs, tag = 'sflag constant byte address 0x0 - dummy sync flag']
  #allocation19 [shape = 's32[]', space=sflag, size = 0x4, offset = 0, fixed_abs, tag = 'sflag constant byte address 0x0 - dummy sync flag']
  #allocation20 [shape = 's32[]', space=sflag, size = 0x4, offset = 0, fixed_abs, tag = 'sflag constant byte address 0x0 - dummy sync flag']
  #allocation21 [shape = 's32[]', space=sflag, size = 0x4, offset = 0, fixed_abs, tag = 'sflag constant byte address 0x0 - dummy sync flag']
  #allocation22 [shape = 's32[]', space=sflag, size = 0x4, offset = 0, fixed_abs, tag = 'sflag constant byte address 0x0 - dummy sync flag']
  #allocation23 [shape = 's32[]', space=sflag, size = 0x4, offset = 0, fixed_abs, tag = 'sflag constant byte address 0x0 - dummy sync flag']
  #allocation24 [shape = 's32[]', space=sflag, size = 0x4, offset = 0, fixed_abs, tag = 'sflag constant byte address 0x0 - dummy sync flag']
  #allocation25 [shape = 's32[]', space=sflag, size = 0x4, offset = 0, fixed_abs, tag = 'sflag constant byte address 0x0 - dummy sync flag']
  #allocation26 [shape = 's32[]', space=sflag, size = 0x4, offset = 0, fixed_abs, tag = 'sflag constant byte address 0x0 - dummy sync flag']
  #allocation27 [shape = 's32[]', space=sflag, size = 0x4, offset = 0, fixed_abs, tag = 'sflag constant byte address 0x0 - dummy sync flag']
  %s0 = inlined_call_operand.hbm [shape: s32[8], index: 0, kind: input, shape index: {}]
  %s1 = inlined_call_operand.hbm [shape: f32[8,128], index: 1, kind: input, shape index: {}]
  %s2 = inlined_call_operand.hbm [shape: f32[10,128], index: 2, kind: input, shape index: {}]
  %s3 = inlined_call_operand.hbm [shape: f32[1,1], index: 3, kind: output, shape index: {}]
  %s4 = sld [smem:[#allocation0]]
  $region58: #{tpu_custom_call.1} parent=0
    _
  %s6 = ssub.s32 1, %s4
  %s7 = scalar_select 0, %s6, %s4
  %9 = dma.hbm_to_smem %s0, 16, [#allocation5], [#allocation4]
  %10 = dma.done [#allocation4], 16
  %11 = sfence
  $region1: #{tpu_custom_call.1} parent=0
    #allocation6 [shape = 'u8[4096]{0}', space=vmem, size = 0x1000, scoped, tag = 'input window, operand 1, single buffered']
    #allocation7 [shape = 's32[1]{0}', space=sflag, size = 0x4, scoped, tag = 'scoped memory for tpu_custom_call.1']
    #allocation8 [shape = 's32[1]{0}', space=sflag, size = 0x4, scoped, tag = 'scoped memory for tpu_custom_call.1']
    #allocation9 [shape = 'u8[512]{0}', space=vmem, size = 0x400, scoped, tag = 'output window, operand 0, single buffered']
    %12 = vsyncpa [#allocation7], 0
    %13 = vsyncpa [#allocation8], 0
    // Predicated region
    $region2: #{tpu_custom_call.1} parent=1 // pred_check
      _
    $region3: #{tpu_custom_call.1} parent=1 // pred_check_branch
      %15 = sbr.rel (0) target = $region5
    $region4: #{tpu_custom_call.1} parent=1 // pred_region
      %s17 = ssub.s32 128, 128
      %18 = vsyncadd [#allocation7], %s17
      %s20 = sshll.u32 [#allocation6], 4
      %s21 = int_to_ptr.vmem [resolvable:$true] %s20
      %23 = dma.hbm_to_vmem [thread:$0]  %s1, 128, %s21, [#allocation7]
    $region5: #{tpu_custom_call.1} parent=1 // pred_fallthru
      _
    // Predicated region
    $region6: #{tpu_custom_call.1} parent=1 // pred_check
      _
    $region7: #{tpu_custom_call.1} parent=1 // pred_check_branch
      %25 = sbr.rel (0) target = $region9
    $region8: #{tpu_custom_call.1} parent=1 // pred_region
      %26 = dma.done [#allocation7], 128
    $region9: #{tpu_custom_call.1} parent=1 // pred_fallthru
      _
    %s27 = smul.u32 0, 8
    %s28 = sld [smem:[#allocation5 + %s27]]
    %s29 = smul.addr %s28, 16
    %s30 = scalar_lea.hbm %s2, %s29
    // Predicated region
    $region10: #{tpu_custom_call.1} parent=1 // pred_check
      _
    $region11: #{tpu_custom_call.1} parent=1 // pred_check_branch
      %32 = sbr.rel target = $region13
    $region12: #{tpu_custom_call.1} parent=1 // pred_region
      %33 = sst [smem:[#allocation12]] [#allocation11]
      %34 = sst [smem:[#allocation13]] [#allocation10]
    $region13: #{tpu_custom_call.1} parent=1 // pred_fallthru
      _
    %36 = shalt.err (0)
    %s38 = sshll.u32 [#allocation2], 4
    %s39 = int_to_ptr.vmem [resolvable:$true] %s38
    %41 = dma.hbm_to_vmem [thread:$0]  %s30, 16, %s39, [#allocation3]
    %s42 = sadd.s32 %s27, 1
    %s43 = sld [smem:[#allocation5 + %s42]]
    %s44 = smul.addr %s43, 16
    %s45 = scalar_lea.hbm %s2, %s44
    %s46 = scalar_lea.vmem [#allocation2], 1
    %s47 = scalar_lea.sflag [#allocation3], 1
    // Predicated region
    $region14: #{tpu_custom_call.1} parent=1 // pred_check
      _
    $region15: #{tpu_custom_call.1} parent=1 // pred_check_branch
      %49 = sbr.rel target = $region17
    $region16: #{tpu_custom_call.1} parent=1 // pred_region
      %50 = sst [smem:[#allocation12]] [#allocation15]
      %51 = sst [smem:[#allocation13]] [#allocation14]
    $region17: #{tpu_custom_call.1} parent=1 // pred_fallthru
      _
    %53 = shalt.err (0)
    %s55 = sshll.u32 %s46, 4
    %s56 = int_to_ptr.vmem [resolvable:$true] %s55
    %58 = dma.hbm_to_vmem [thread:$0]  %s45, 16, %s56, %s47
    %s59 = sadd.s32 %s27, 2
    %s60 = sld [smem:[#allocation5 + %s59]]
    %s61 = smul.addr %s60, 16
    %s62 = scalar_lea.hbm %s2, %s61
    %s63 = scalar_lea.vmem [#allocation2], 2
    %s64 = scalar_lea.sflag [#allocation3], 2
    // Predicated region
    $region18: #{tpu_custom_call.1} parent=1 // pred_check
      _
    $region19: #{tpu_custom_call.1} parent=1 // pred_check_branch
      %66 = sbr.rel target = $region21
    $region20: #{tpu_custom_call.1} parent=1 // pred_region
      %67 = sst [smem:[#allocation12]] [#allocation17]
      %68 = sst [smem:[#allocation13]] [#allocation16]
    $region21: #{tpu_custom_call.1} parent=1 // pred_fallthru
      _
    %70 = shalt.err (0)
    %s72 = sshll.u32 %s63, 4
    %s73 = int_to_ptr.vmem [resolvable:$true] %s72
    %75 = dma.hbm_to_vmem [thread:$0]  %s62, 16, %s73, %s64
    %s76 = sadd.s32 %s27, 3
    %s77 = sld [smem:[#allocation5 + %s76]]
    %s78 = smul.addr %s77, 16
    %s79 = scalar_lea.hbm %s2, %s78
    %s80 = scalar_lea.vmem [#allocation2], 3
    %s81 = scalar_lea.sflag [#allocation3], 3
    // Predicated region
    $region22: #{tpu_custom_call.1} parent=1 // pred_check
      _
    $region23: #{tpu_custom_call.1} parent=1 // pred_check_branch
      %83 = sbr.rel target = $region25
    $region24: #{tpu_custom_call.1} parent=1 // pred_region
      %84 = sst [smem:[#allocation12]] [#allocation19]
      %85 = sst [smem:[#allocation13]] [#allocation18]
    $region25: #{tpu_custom_call.1} parent=1 // pred_fallthru
      _
    %87 = shalt.err (0)
    %s89 = sshll.u32 %s80, 4
    %s90 = int_to_ptr.vmem [resolvable:$true] %s89
    %92 = dma.hbm_to_vmem [thread:$0]  %s79, 16, %s90, %s81
    %s93 = sadd.s32 %s27, 4
    %s94 = sld [smem:[#allocation5 + %s93]]
    %s95 = smul.addr %s94, 16
    %s96 = scalar_lea.hbm %s2, %s95
    %s97 = scalar_lea.vmem [#allocation2], 4
    %s98 = scalar_lea.sflag [#allocation3], 4
    // Predicated region
    $region26: #{tpu_custom_call.1} parent=1 // pred_check
      _
    $region27: #{tpu_custom_call.1} parent=1 // pred_check_branch
      %100 = sbr.rel target = $region29
    $region28: #{tpu_custom_call.1} parent=1 // pred_region
      %101 = sst [smem:[#allocation12]] [#allocation21]
      %102 = sst [smem:[#allocation13]] [#allocation20]
    $region29: #{tpu_custom_call.1} parent=1 // pred_fallthru
      _
    %104 = shalt.err (0)
    %s106 = sshll.u32 %s97, 4
    %s107 = int_to_ptr.vmem [resolvable:$true] %s106
    %109 = dma.hbm_to_vmem [thread:$0]  %s96, 16, %s107, %s98
    %s110 = sadd.s32 %s27, 5
    %s111 = sld [smem:[#allocation5 + %s110]]
    %s112 = smul.addr %s111, 16
    %s113 = scalar_lea.hbm %s2, %s112
    %s114 = scalar_lea.vmem [#allocation2], 5
    %s115 = scalar_lea.sflag [#allocation3], 5
    // Predicated region
    $region30: #{tpu_custom_call.1} parent=1 // pred_check
      _
    $region31: #{tpu_custom_call.1} parent=1 // pred_check_branch
      %117 = sbr.rel target = $region33
    $region32: #{tpu_custom_call.1} parent=1 // pred_region
      %118 = sst [smem:[#allocation12]] [#allocation23]
      %119 = sst [smem:[#allocation13]] [#allocation22]
    $region33: #{tpu_custom_call.1} parent=1 // pred_fallthru
      _
    %121 = shalt.err (0)
    %s123 = sshll.u32 %s114, 4
    %s124 = int_to_ptr.vmem [resolvable:$true] %s123
    %126 = dma.hbm_to_vmem [thread:$0]  %s113, 16, %s124, %s115
    %s127 = sadd.s32 %s27, 6
    %s128 = sld [smem:[#allocation5 + %s127]]
    %s129 = smul.addr %s128, 16
    %s130 = scalar_lea.hbm %s2, %s129
    %s131 = scalar_lea.vmem [#allocation2], 6
    %s132 = scalar_lea.sflag [#allocation3], 6
    // Predicated region
    $region34: #{tpu_custom_call.1} parent=1 // pred_check
      _
    $region35: #{tpu_custom_call.1} parent=1 // pred_check_branch
      %134 = sbr.rel target = $region37
    $region36: #{tpu_custom_call.1} parent=1 // pred_region
      %135 = sst [smem:[#allocation12]] [#allocation25]
      %136 = sst [smem:[#allocation13]] [#allocation24]
    $region37: #{tpu_custom_call.1} parent=1 // pred_fallthru
      _
    %138 = shalt.err (0)
    %s140 = sshll.u32 %s131, 4
    %s141 = int_to_ptr.vmem [resolvable:$true] %s140
    %143 = dma.hbm_to_vmem [thread:$0]  %s130, 16, %s141, %s132
    %s144 = sadd.s32 %s27, 7
    %s145 = sld [smem:[#allocation5 + %s144]]
    %s146 = smul.addr %s145, 16
    %s147 = scalar_lea.hbm %s2, %s146
    %s148 = scalar_lea.vmem [#allocation2], 7
    %s149 = scalar_lea.sflag [#allocation3], 7
    // Predicated region
    $region38: #{tpu_custom_call.1} parent=1 // pred_check
      _
    $region39: #{tpu_custom_call.1} parent=1 // pred_check_branch
      %151 = sbr.rel target = $region41
    $region40: #{tpu_custom_call.1} parent=1 // pred_region
      %152 = sst [smem:[#allocation12]] [#allocation27]
      %153 = sst [smem:[#allocation13]] [#allocation26]
    $region41: #{tpu_custom_call.1} parent=1 // pred_fallthru
      _
    %155 = shalt.err (0)
    %s157 = sshll.u32 %s148, 4
    %s158 = int_to_ptr.vmem [resolvable:$true] %s157
    %160 = dma.hbm_to_vmem [thread:$0]  %s147, 16, %s158, %s149
    %162 = dma.done [#allocation3], 16
    %164 = dma.done %s47, 16
    %166 = dma.done %s64, 16
    %168 = dma.done %s81, 16
    %170 = dma.done %s98, 16
    %172 = dma.done %s115, 16
    %174 = dma.done %s132, 16
    %176 = dma.done %s149, 16
    %v177 = vld [vmem:[#allocation6] sm:$0xff]
    %v178 = vld [vmem:[#allocation2] sm:$0xff]
    %v179 = vmul.f32 %v177, %v178
    %180 = vadd.xlane.f32.xlu0 %v179
    %v181 = vpop.xlane.xlu0 %180
    %v182 = vmul.f32 %v177, %v177
    %183 = vadd.xlane.f32.xlu0 %v182
    %v184 = vpop.xlane.xlu0 %183
    %v185 = vrsqrt.pop %v184
    %v186 = vmul.f32 %v184, %v185
    %vm187 = vcmp.eq.f32.partialorder %v184, inf
    %v188 = vsel %vm187, %v184, %v186
    %vm189 = vcmp.eq.f32.partialorder %v184, 0.0
    %v190 = vand.u32 %v184, 2147483648
    %v191 = vsel %vm189, %v190, %v188
    %v192 = vmul.f32 %v178, %v178
    %193 = vadd.xlane.f32.xlu0 %v192
    %v194 = vpop.xlane.xlu0 %193
    %v195 = vrsqrt.pop %v194
    %v196 = vmul.f32 %v194, %v195
    %vm197 = vcmp.eq.f32.partialorder %v194, inf
    %v198 = vsel %vm197, %v194, %v196
    %vm199 = vcmp.eq.f32.partialorder %v194, 0.0
    %v200 = vand.u32 %v194, 2147483648
    %v201 = vsel %vm199, %v200, %v198
    %v202 = vmul.f32 %v191, %v201
    %v203 = vadd.f32 %v202, 0.0001
    %v204 = vrcp.pop %v203
    %v205 = vmul.f32 %v181, %v204
    %v206 = vmax.f32 %v205, 1e-12
    %v207 = vmin.f32 %v206, 1e+12
    %p208 = scmp.eq.s32.totalorder 0, 0
    // Predicated region
    $region42: #{tpu_custom_call.1} parent=1 // pred_check
      %p209 = pneg %p208
    $region43: #{tpu_custom_call.1} parent=1 // pred_check_branch
      %211 = sbr.rel (%p209) target = $region45
    $region44: #{tpu_custom_call.1} parent=1 // pred_region
      %vm212 = vcmask 0
      %213 = vst.msk [vmem:[#allocation9] sm:$0x1] %vm212, 0.0
    $region45: #{tpu_custom_call.1} parent=1 // pred_fallthru
      _
    %v214 = vld [vmem:[#allocation9] sm:$0x1]
    %vm215 = vcmask 7168
    %v216 = vsel %vm215, %v207, 0.0
    %217 = vadd.xlane.f32.xlu0 %v216
    %v218 = vpop.xlane.xlu0 %217
    %v219 = vrot.slane %v218, 4
    %v220 = vadd.f32 %v218, %v219
    %v221 = vrot.slane %v220, 2
    %v222 = vadd.f32 %v220, %v221
    %v223 = vrot.slane %v222, 1
    %v224 = vadd.f32 %v222, %v223
    %s225 = vtos %v224
    %v226 = vstv %s225
    %v227 = vadd.f32 %v214, %v226
    %vm228 = vcmask 0
    %229 = vst.msk [vmem:[#allocation9] sm:$0x1] %vm228, %v227
    // Predicated region
    $region46: #{tpu_custom_call.1} parent=1 // pred_check
      %p230 = pneg %p208
    $region47: #{tpu_custom_call.1} parent=1 // pred_check_branch
      %232 = sbr.rel (%p230) target = $region49
    $region48: #{tpu_custom_call.1} parent=1 // pred_region
      %v233 = vld [vmem:[#allocation9] sm:$0x1]
      %v234 = vadd.f32 %v233, 7.2e-11
      %v235 = vsub.f32 0.0, %v234
      %v236 = vrcp.pop 8.0
      %v237 = vmul.f32 %v235, %v236
      %238 = vst.msk [vmem:[#allocation9] sm:$0x1] %vm228, %v237
    $region49: #{tpu_custom_call.1} parent=1 // pred_fallthru
      _
    // Predicated region
    $region50: #{tpu_custom_call.1} parent=1 // pred_check
      _
    $region51: #{tpu_custom_call.1} parent=1 // pred_check_branch
      %240 = sbr.rel (0) target = $region53
    $region52: #{tpu_custom_call.1} parent=1 // pred_region
      %s242 = ssub.s32 16, 16
      %243 = vsyncadd [#allocation8], %s242
      %s245 = sshll.u32 [#allocation9], 4
      %s246 = int_to_ptr.vmem [resolvable:$true] %s245
      %248 = dma.vmem_to_hbm [thread:$0]  %s246, 16, %s3, [#allocation8]
    $region53: #{tpu_custom_call.1} parent=1 // pred_fallthru
      _
    // Predicated region
    $region54: #{tpu_custom_call.1} parent=1 // pred_check
      _
    $region55: #{tpu_custom_call.1} parent=1 // pred_check_branch
      %250 = sbr.rel (0) target = $region57
    $region56: #{tpu_custom_call.1} parent=1 // pred_region
      %251 = dma.done [#allocation8], 16
    $region57: #{tpu_custom_call.1} parent=1 // pred_fallthru
      _
    %252 = vsyncpa [#allocation7], 1
    %253 = vsyncpa [#allocation8], 1
  %254 = vsyncmov [#allocation3]
  %s255 = vpop.sfrf %254
  %p256 = scmp.eq.s32.totalorder %s255, 0
  %p257 = pneg %p256
  %259 = shalt.err (%p257)
  %s260 = scalar_lea.sflag [#allocation3], 1
  %261 = vsyncmov %s260
  %s262 = vpop.sfrf %261
  %p263 = scmp.eq.s32.totalorder %s262, 0
  %p264 = pneg %p263
  %266 = shalt.err (%p264)
  %s267 = scalar_lea.sflag [#allocation3], 2
  %268 = vsyncmov %s267
  %s269 = vpop.sfrf %268
  %p270 = scmp.eq.s32.totalorder %s269, 0
  %p271 = pneg %p270
  %273 = shalt.err (%p271)
  %s274 = scalar_lea.sflag [#allocation3], 3
  %275 = vsyncmov %s274
  %s276 = vpop.sfrf %275
  %p277 = scmp.eq.s32.totalorder %s276, 0
  %p278 = pneg %p277
  %280 = shalt.err (%p278)
  %s281 = scalar_lea.sflag [#allocation3], 4
  %282 = vsyncmov %s281
  %s283 = vpop.sfrf %282
  %p284 = scmp.eq.s32.totalorder %s283, 0
  %p285 = pneg %p284
  %287 = shalt.err (%p285)
  %s288 = scalar_lea.sflag [#allocation3], 5
  %289 = vsyncmov %s288
  %s290 = vpop.sfrf %289
  %p291 = scmp.eq.s32.totalorder %s290, 0
  %p292 = pneg %p291
  %294 = shalt.err (%p292)
  %s295 = scalar_lea.sflag [#allocation3], 6
  %296 = vsyncmov %s295
  %s297 = vpop.sfrf %296
  %p298 = scmp.eq.s32.totalorder %s297, 0
  %p299 = pneg %p298
  %301 = shalt.err (%p299)
  %s302 = scalar_lea.sflag [#allocation3], 7
  %303 = vsyncmov %s302
  %s304 = vpop.sfrf %303
  %p305 = scmp.eq.s32.totalorder %s304, 0
  %p306 = pneg %p305
  %308 = shalt.err (%p306)

</llo_original>
